<compile_context>
chip_gen: v6e
topology: v6e:2x2x1
jax: 0.10.0
libtpu: 0.0.40
codegen_flags: <defaults>
</compile_context>

<pallas_src>
import functools

import jax
import jax.numpy as jnp
from jax import lax
from jax.experimental import pallas as pl
from jax.experimental.pallas import tpu as pltpu


def rnn_s2s_kernel(x2d_ref, h0_ref,
                   wih_e_ref, whh_e_ref, b_e_ref,
                   whh_d_ref, b_d_ref,
                   wout_ref, bout_ref,
                   out_ref,
                   *, seq_len, horizon, batch):
    """Full S2S forward on VMEM-resident tensors.

    x2d_ref:   (T*B, U)  encoder inputs, time-major, flattened over (T, B)
    h0_ref:    (B, H)    initial hidden state (init_state repeated over batch)
    wih_e_ref: (U, H)    encoder input->hidden weight (pre-transposed)
    whh_e_ref: (H, H)    encoder hidden->hidden weight (pre-transposed)
    b_e_ref:   (1, H)    encoder combined bias (b_ih + b_hh)
    whh_d_ref: (H, H)    decoder hidden->hidden weight (pre-transposed)
    b_d_ref:   (1, H)    decoder combined bias (b_ih + b_hh)
    wout_ref:  (H, Y)    linear decoder weight (pre-transposed)
    bout_ref:  (1, Y)    linear decoder bias
    out_ref:   (horizon*B, Y) forecast (reshaped to (horizon, B, Y) by wrapper)
    """
    B = batch
    H = whh_e_ref.shape[1]

    # ---- hoist every weight / bias load out of the loops (stay in vregs) ----
    wih_e = wih_e_ref[...]                                   # (U, H)
    whh_e = whh_e_ref[...]                                   # (H, H)
    whh_d = whh_d_ref[...]                                   # (H, H)
    wout = wout_ref[...]                                     # (H, Y)
    b_e = b_e_ref[...]                                       # (1, H)
    b_d_b = jnp.broadcast_to(b_d_ref[...], (B, H))           # broadcast ONCE
    bout = bout_ref[...]                                     # (1, Y)

    # ---- encoder input projection: one matmul for all T steps ----
    # xproj rows [t*B:(t+1)*B] == x_t @ W_ih^T + (b_ih + b_hh)
    xproj = jnp.dot(x2d_ref[...], wih_e,
                    preferred_element_type=jnp.float32) + b_e   # (T*B, H)

    # ---- encoder recurrence: h carried in registers, fully unrolled ----
    h = h0_ref[...]                                          # (B, H)
    for t in range(seq_len):
        h = jnp.tanh(xproj[t * B:(t + 1) * B, :]
                     + jnp.dot(h, whh_e, preferred_element_type=jnp.float32))

    # ---- decoder recurrence on exact-zero inputs (W_ih @ 0 term vanishes) ----
    states = []
    for _ in range(horizon):
        h = jnp.tanh(jnp.dot(h, whh_d, preferred_element_type=jnp.float32)
                     + b_d_b)
        states.append(h)
    h_stack = jnp.concatenate(states, axis=0)                # (horizon*B, H)

    # ---- single output projection + single store ----
    y = jnp.dot(h_stack, wout, preferred_element_type=jnp.float32) + bout
    out_ref[...] = y.astype(out_ref.dtype)


def rnn_s2s_forward(past_features, params, forecast_horizon):
    """past_features: (T, B, U) float32. Returns forecast (horizon, B, Y)."""
    T, B, U = past_features.shape
    H = params["whh_enc"].shape[0]
    Y = params["w_out"].shape[0]
    horizon = min(forecast_horizon, T)  # zeros_like(past)[:horizon] semantics
    if horizon <= 0:
        return jnp.zeros((0, B, Y), jnp.float32)

    # Pre-transpose PyTorch-convention weights so the kernel does x @ W.
    wih_e = params["wih_enc"].T                              # (U, H)
    whh_e = params["whh_enc"].T                              # (H, H)
    b_e = (params["bih_enc"] + params["bhh_enc"]).reshape(1, H)
    whh_d = params["whh_dec"].T                              # (H, H)
    b_d = (params["bih_dec"] + params["bhh_dec"]).reshape(1, H)
    w_out = params["w_out"].T                                # (H, Y)
    b_out = params["b_out"].reshape(1, Y)
    # repeat_init_state: (1, H) -> (B, H)
    h0 = jnp.broadcast_to(params["init_state"], (B, H)).astype(jnp.float32)

    # Flatten (T, B, U) -> (T*B, U) so the encoder input projection is one matmul.
    x2d = past_features.astype(jnp.float32).reshape(T * B, U)

    kernel = functools.partial(rnn_s2s_kernel,
                               seq_len=T, horizon=horizon, batch=B)

    # TODO(synk): whole-array-in-VMEM design assumes small T/B/H; if scaled up
    # (esp. v7x 64 MiB VMEM), tile x over T with a BlockSpec / emit_pipeline.
    out2d = pl.pallas_call(
        kernel,
        out_shape=jax.ShapeDtypeStruct((horizon * B, Y), jnp.float32),
        in_specs=[pl.BlockSpec(memory_space=pltpu.MemorySpace.VMEM)] * 9,
        out_specs=pl.BlockSpec(memory_space=pltpu.MemorySpace.VMEM),
    )(x2d, h0, wih_e, whh_e, b_e, whh_d, b_d, w_out, b_out)

    return out2d.reshape(horizon, B, Y)


def rnn_s2s_reference(past_features, params, forecast_horizon):
    """Pure-JAX reference with identical semantics (for verification)."""
    T, B, U = past_features.shape
    H = params["whh_enc"].shape[0]
    horizon = min(forecast_horizon, T)
    h = jnp.broadcast_to(params["init_state"], (B, H)).astype(jnp.float32)

    def enc(h, x_t):
        h = jnp.tanh(x_t @ params["wih_enc"].T + params["bih_enc"]
                     + h @ params["whh_enc"].T + params["bhh_enc"])
        return h, None

    h, _ = lax.scan(enc, h, past_features)

    def dec(h, _):
        h = jnp.tanh(params["bih_dec"]
                     + h @ params["whh_dec"].T + params["bhh_dec"])
        return h, h

    _, states = lax.scan(dec, h, None, length=horizon)
    return states @ params["w_out"].T + params["b_out"]


def init_params(key, n_features_U, n_state_neurons, n_features_Y):
    """Deterministic parameter init, PyTorch weight-shape conventions."""
    H, U, Y = n_state_neurons, n_features_U, n_features_Y
    ks = jax.random.split(key, 12)
    bound = 1.0 / jnp.sqrt(jnp.float32(H))
    u = lambda k, shape: jax.random.uniform(k, shape, jnp.float32, -bound, bound)
    return {
        # encoder nn.RNN
        "wih_enc": u(ks[0], (H, U)),
        "whh_enc": u(ks[1], (H, H)),
        "bih_enc": u(ks[2], (H,)),
        "bhh_enc": u(ks[3], (H,)),
        # decoder nn.RNN
        "wih_dec": u(ks[4], (H, U)),   # unused: decoder inputs are zeros
        "whh_dec": u(ks[5], (H, H)),
        "bih_dec": u(ks[6], (H,)),
        "bhh_dec": u(ks[7], (H,)),
        # state_output Linear(H -> Y)
        "w_out": u(ks[8], (Y, H)),
        "b_out": u(ks[9], (Y,)),
        # init_state Parameter(1, H)  (float64 in torch; float32 here)
        "init_state": jax.random.uniform(ks[10], (1, H), jnp.float32),
    }


if __name__ == "__main__":
    # Small shapes consistent with the module's forward:
    #   past_features: (seq_len=8, batch=2, n_features_U=4)
    T, B, U = 8, 2, 4
    H, Y = 32, 4
    forecast_horizon = 4

    key = jax.random.PRNGKey(0)
    k_x, k_p = jax.random.split(key)
    past_features = jax.random.normal(k_x, (T, B, U), jnp.float32)
    params = init_params(k_p, U, H, Y)

    forecast = rnn_s2s_forward(past_features, params, forecast_horizon)
    forecast = jax.block_until_ready(forecast)

    ref = rnn_s2s_reference(past_features, params, forecast_horizon)
    assert forecast.shape == (forecast_horizon, B, Y)
    assert jnp.allclose(forecast, ref, atol=1e-5, rtol=1e-5)

    print("KERNEL_OK")
</pallas_src>

<mosaic_0001>
module attributes {stable_mosaic.version = 11 : i64} {
  func.func @rnn_s2s_kernel(%arg0: memref<16x4xf32, #tpu.memory_space<vmem>>, %arg1: memref<2x32xf32, #tpu.memory_space<vmem>>, %arg2: memref<4x32xf32, #tpu.memory_space<vmem>>, %arg3: memref<32x32xf32, #tpu.memory_space<vmem>>, %arg4: memref<1x32xf32, #tpu.memory_space<vmem>>, %arg5: memref<32x32xf32, #tpu.memory_space<vmem>>, %arg6: memref<1x32xf32, #tpu.memory_space<vmem>>, %arg7: memref<32x4xf32, #tpu.memory_space<vmem>>, %arg8: memref<1x4xf32, #tpu.memory_space<vmem>>, %arg9: memref<8x4xf32, #tpu.memory_space<vmem>>) attributes {dimension_semantics = [], scalar_prefetch = 0 : i64, scratch_operands = 0 : i64, tpu.core_type = #tpu.core_type<tc>} {
    %c0 = arith.constant 0 : index
    %c0_0 = arith.constant 0 : index
    %0 = vector.load %arg2[%c0, %c0_0] : memref<4x32xf32, #tpu.memory_space<vmem>>, vector<4x32xf32>
    %c0_1 = arith.constant 0 : index
    %c0_2 = arith.constant 0 : index
    %1 = vector.load %arg3[%c0_1, %c0_2] : memref<32x32xf32, #tpu.memory_space<vmem>>, vector<32x32xf32>
    %c0_3 = arith.constant 0 : index
    %c0_4 = arith.constant 0 : index
    %2 = vector.load %arg5[%c0_3, %c0_4] : memref<32x32xf32, #tpu.memory_space<vmem>>, vector<32x32xf32>
    %c0_5 = arith.constant 0 : index
    %c0_6 = arith.constant 0 : index
    %3 = vector.load %arg7[%c0_5, %c0_6] : memref<32x4xf32, #tpu.memory_space<vmem>>, vector<32x4xf32>
    %c0_7 = arith.constant 0 : index
    %c0_8 = arith.constant 0 : index
    %4 = vector.load %arg4[%c0_7, %c0_8] : memref<1x32xf32, #tpu.memory_space<vmem>>, vector<1x32xf32>
    %c0_9 = arith.constant 0 : index
    %c0_10 = arith.constant 0 : index
    %5 = vector.load %arg6[%c0_9, %c0_10] : memref<1x32xf32, #tpu.memory_space<vmem>>, vector<1x32xf32>
    %6 = vector.shape_cast %5 : vector<1x32xf32> to vector<1x32xf32>
    %7 = vector.broadcast %6 : vector<1x32xf32> to vector<2x32xf32>
    %c0_11 = arith.constant 0 : index
    %c0_12 = arith.constant 0 : index
    %8 = vector.load %arg8[%c0_11, %c0_12] : memref<1x4xf32, #tpu.memory_space<vmem>>, vector<1x4xf32>
    %c0_13 = arith.constant 0 : index
    %c0_14 = arith.constant 0 : index
    %9 = vector.load %arg0[%c0_13, %c0_14] : memref<16x4xf32, #tpu.memory_space<vmem>>, vector<16x4xf32>
    %cst = arith.constant dense<0.000000e+00> : vector<16x32xf32>
    %10 = tpu.matmul %9, %0, %cst {dimension_numbers = #tpu.dot_dimension_numbers<[1], [0], [0], [1], [0, 0, 1, 1], [], []>} : vector<16x4xf32>, vector<4x32xf32>, vector<16x32xf32> -> vector<16x32xf32>
    %11 = vector.broadcast %4 : vector<1x32xf32> to vector<16x32xf32>
    %12 = arith.addf %10, %11 : vector<16x32xf32>
    %c0_15 = arith.constant 0 : index
    %c0_16 = arith.constant 0 : index
    %13 = vector.load %arg1[%c0_15, %c0_16] : memref<2x32xf32, #tpu.memory_space<vmem>>, vector<2x32xf32>
    %14 = vector.extract_strided_slice %12 {offsets = [0, 0], sizes = [2, 32], strides = [1, 1]} : vector<16x32xf32> to vector<2x32xf32>
    %cst_17 = arith.constant dense<0.000000e+00> : vector<2x32xf32>
    %15 = tpu.matmul %13, %1, %cst_17 {dimension_numbers = #tpu.dot_dimension_numbers<[1], [0], [0], [1], [0, 0, 1, 1], [], []>} : vector<2x32xf32>, vector<32x32xf32>, vector<2x32xf32> -> vector<2x32xf32>
    %16 = arith.addf %14, %15 : vector<2x32xf32>
    %17 = math.tanh %16 : vector<2x32xf32>
    %18 = vector.extract_strided_slice %12 {offsets = [2, 0], sizes = [2, 32], strides = [1, 1]} : vector<16x32xf32> to vector<2x32xf32>
    %cst_18 = arith.constant dense<0.000000e+00> : vector<2x32xf32>
    %19 = tpu.matmul %17, %1, %cst_18 {dimension_numbers = #tpu.dot_dimension_numbers<[1], [0], [0], [1], [0, 0, 1, 1], [], []>} : vector<2x32xf32>, vector<32x32xf32>, vector<2x32xf32> -> vector<2x32xf32>
    %20 = arith.addf %18, %19 : vector<2x32xf32>
    %21 = math.tanh %20 : vector<2x32xf32>
    %22 = vector.extract_strided_slice %12 {offsets = [4, 0], sizes = [2, 32], strides = [1, 1]} : vector<16x32xf32> to vector<2x32xf32>
    %cst_19 = arith.constant dense<0.000000e+00> : vector<2x32xf32>
    %23 = tpu.matmul %21, %1, %cst_19 {dimension_numbers = #tpu.dot_dimension_numbers<[1], [0], [0], [1], [0, 0, 1, 1], [], []>} : vector<2x32xf32>, vector<32x32xf32>, vector<2x32xf32> -> vector<2x32xf32>
    %24 = arith.addf %22, %23 : vector<2x32xf32>
    %25 = math.tanh %24 : vector<2x32xf32>
    %26 = vector.extract_strided_slice %12 {offsets = [6, 0], sizes = [2, 32], strides = [1, 1]} : vector<16x32xf32> to vector<2x32xf32>
    %cst_20 = arith.constant dense<0.000000e+00> : vector<2x32xf32>
    %27 = tpu.matmul %25, %1, %cst_20 {dimension_numbers = #tpu.dot_dimension_numbers<[1], [0], [0], [1], [0, 0, 1, 1], [], []>} : vector<2x32xf32>, vector<32x32xf32>, vector<2x32xf32> -> vector<2x32xf32>
    %28 = arith.addf %26, %27 : vector<2x32xf32>
    %29 = math.tanh %28 : vector<2x32xf32>
    %30 = vector.extract_strided_slice %12 {offsets = [8, 0], sizes = [2, 32], strides = [1, 1]} : vector<16x32xf32> to vector<2x32xf32>
    %cst_21 = arith.constant dense<0.000000e+00> : vector<2x32xf32>
    %31 = tpu.matmul %29, %1, %cst_21 {dimension_numbers = #tpu.dot_dimension_numbers<[1], [0], [0], [1], [0, 0, 1, 1], [], []>} : vector<2x32xf32>, vector<32x32xf32>, vector<2x32xf32> -> vector<2x32xf32>
    %32 = arith.addf %30, %31 : vector<2x32xf32>
    %33 = math.tanh %32 : vector<2x32xf32>
    %34 = vector.extract_strided_slice %12 {offsets = [10, 0], sizes = [2, 32], strides = [1, 1]} : vector<16x32xf32> to vector<2x32xf32>
    %cst_22 = arith.constant dense<0.000000e+00> : vector<2x32xf32>
    %35 = tpu.matmul %33, %1, %cst_22 {dimension_numbers = #tpu.dot_dimension_numbers<[1], [0], [0], [1], [0, 0, 1, 1], [], []>} : vector<2x32xf32>, vector<32x32xf32>, vector<2x32xf32> -> vector<2x32xf32>
    %36 = arith.addf %34, %35 : vector<2x32xf32>
    %37 = math.tanh %36 : vector<2x32xf32>
    %38 = vector.extract_strided_slice %12 {offsets = [12, 0], sizes = [2, 32], strides = [1, 1]} : vector<16x32xf32> to vector<2x32xf32>
    %cst_23 = arith.constant dense<0.000000e+00> : vector<2x32xf32>
    %39 = tpu.matmul %37, %1, %cst_23 {dimension_numbers = #tpu.dot_dimension_numbers<[1], [0], [0], [1], [0, 0, 1, 1], [], []>} : vector<2x32xf32>, vector<32x32xf32>, vector<2x32xf32> -> vector<2x32xf32>
    %40 = arith.addf %38, %39 : vector<2x32xf32>
    %41 = math.tanh %40 : vector<2x32xf32>
    %42 = vector.extract_strided_slice %12 {offsets = [14, 0], sizes = [2, 32], strides = [1, 1]} : vector<16x32xf32> to vector<2x32xf32>
    %cst_24 = arith.constant dense<0.000000e+00> : vector<2x32xf32>
    %43 = tpu.matmul %41, %1, %cst_24 {dimension_numbers = #tpu.dot_dimension_numbers<[1], [0], [0], [1], [0, 0, 1, 1], [], []>} : vector<2x32xf32>, vector<32x32xf32>, vector<2x32xf32> -> vector<2x32xf32>
    %44 = arith.addf %42, %43 : vector<2x32xf32>
    %45 = math.tanh %44 : vector<2x32xf32>
    %cst_25 = arith.constant dense<0.000000e+00> : vector<2x32xf32>
    %46 = tpu.matmul %45, %2, %cst_25 {dimension_numbers = #tpu.dot_dimension_numbers<[1], [0], [0], [1], [0, 0, 1, 1], [], []>} : vector<2x32xf32>, vector<32x32xf32>, vector<2x32xf32> -> vector<2x32xf32>
    %47 = arith.addf %46, %7 : vector<2x32xf32>
    %48 = math.tanh %47 : vector<2x32xf32>
    %cst_26 = arith.constant dense<0.000000e+00> : vector<2x32xf32>
    %49 = tpu.matmul %48, %2, %cst_26 {dimension_numbers = #tpu.dot_dimension_numbers<[1], [0], [0], [1], [0, 0, 1, 1], [], []>} : vector<2x32xf32>, vector<32x32xf32>, vector<2x32xf32> -> vector<2x32xf32>
    %50 = arith.addf %49, %7 : vector<2x32xf32>
    %51 = math.tanh %50 : vector<2x32xf32>
    %cst_27 = arith.constant dense<0.000000e+00> : vector<2x32xf32>
    %52 = tpu.matmul %51, %2, %cst_27 {dimension_numbers = #tpu.dot_dimension_numbers<[1], [0], [0], [1], [0, 0, 1, 1], [], []>} : vector<2x32xf32>, vector<32x32xf32>, vector<2x32xf32> -> vector<2x32xf32>
    %53 = arith.addf %52, %7 : vector<2x32xf32>
    %54 = math.tanh %53 : vector<2x32xf32>
    %cst_28 = arith.constant dense<0.000000e+00> : vector<2x32xf32>
    %55 = tpu.matmul %54, %2, %cst_28 {dimension_numbers = #tpu.dot_dimension_numbers<[1], [0], [0], [1], [0, 0, 1, 1], [], []>} : vector<2x32xf32>, vector<32x32xf32>, vector<2x32xf32> -> vector<2x32xf32>
    %56 = arith.addf %55, %7 : vector<2x32xf32>
    %57 = math.tanh %56 : vector<2x32xf32>
    %58 = tpu.concatenate %48, %51, %54, %57 in 0 : vector<2x32xf32>, vector<2x32xf32>, vector<2x32xf32>, vector<2x32xf32> -> vector<8x32xf32>
    %cst_29 = arith.constant dense<0.000000e+00> : vector<8x4xf32>
    %59 = tpu.matmul %58, %3, %cst_29 {dimension_numbers = #tpu.dot_dimension_numbers<[1], [0], [0], [1], [0, 0, 1, 1], [], []>} : vector<8x32xf32>, vector<32x4xf32>, vector<8x4xf32> -> vector<8x4xf32>
    %60 = vector.broadcast %8 : vector<1x4xf32> to vector<8x4xf32>
    %61 = arith.addf %59, %60 : vector<8x4xf32>
    %c0_30 = arith.constant 0 : index
    %c0_31 = arith.constant 0 : index
    %62 = vector.load %arg9[%c0_30, %c0_31] : memref<8x4xf32, #tpu.memory_space<vmem>>, vector<8x4xf32>
    tpu.vector_store %arg9[%c0_30, %c0_31], %61 {strides = array<i32>} : memref<8x4xf32, #tpu.memory_space<vmem>>, vector<8x4xf32>,
    return
  }
}

</mosaic_0001>

<llo_original>
// kernel: tpu_custom_call.1
$region0: #{tpu_custom_call.1}
  #allocation0 [shape = 'u32[]', space=smem, size = 0x4, offset = 0x4, fixed_abs, tag = 'smem constant byte address 0x4 - core index']
  #allocation1 [shape = 'u32[144,128]{1,0:T(1,128)}', space=vmem, size = 0x12000, scoped, tag = 'internal scratch']
  %s0 = inlined_call_operand.vmem [shape: f32[16,4], index: 0, kind: input, shape index: {}]
  %s1 = inlined_call_operand.hbm [shape: f32[2,32], index: 1, kind: input, shape index: {}]
  %s2 = inlined_call_operand.hbm [shape: f32[4,32], index: 2, kind: input, shape index: {}]
  %s3 = inlined_call_operand.vmem [shape: f32[32,32], index: 3, kind: input, shape index: {}]
  %s4 = inlined_call_operand.hbm [shape: f32[1,32], index: 4, kind: input, shape index: {}]
  %s5 = inlined_call_operand.vmem [shape: f32[32,32], index: 5, kind: input, shape index: {}]
  %s6 = inlined_call_operand.hbm [shape: f32[1,32], index: 6, kind: input, shape index: {}]
  %s7 = inlined_call_operand.vmem [shape: f32[32,4], index: 7, kind: input, shape index: {}]
  %s8 = inlined_call_operand.vmem [shape: f32[1,4], index: 8, kind: input, shape index: {}]
  %s9 = inlined_call_operand.vmem [shape: f32[8,4], index: 9, kind: output, shape index: {}]
  %s10 = sld [smem:[#allocation0]]
  $region62: #{tpu_custom_call.1} parent=0
    _
  %s12 = ssub.s32 1, %s10
  %s13 = scalar_select 0, %s12, %s10
  $region1: #{tpu_custom_call.1} parent=0
    #allocation2 [shape = 'u8[1024]{0}', space=vmem, size = 0x400, scoped, tag = 'input window, operand 1, single buffered']
    #allocation3 [shape = 's32[1]{0}', space=sflag, size = 0x4, scoped, tag = 'scoped memory for tpu_custom_call.1']
    #allocation4 [shape = 'u8[2048]{0}', space=vmem, size = 0x800, scoped, tag = 'input window, operand 2, single buffered']
    #allocation5 [shape = 's32[1]{0}', space=sflag, size = 0x4, scoped, tag = 'scoped memory for tpu_custom_call.1']
    #allocation6 [shape = 'u8[512]{0}', space=vmem, size = 0x400, scoped, tag = 'input window, operand 4, single buffered']
    #allocation7 [shape = 'u8[512]{0}', space=vmem, size = 0x400, scoped, tag = 'input window, operand 6, single buffered']
    #allocation8 [shape = 's32[1]{0}', space=sflag, size = 0x4, scoped, tag = 'scoped memory for tpu_custom_call.1']
    %14 = vsyncpa [#allocation3], 0
    %15 = vsyncpa [#allocation5], 0
    %16 = vsyncpa [#allocation8], 0
    // Predicated region
    $region2: #{tpu_custom_call.1} parent=1 // pred_check
      _
    $region3: #{tpu_custom_call.1} parent=1 // pred_check_branch
      %18 = sbr.rel (0) target = $region5
    $region4: #{tpu_custom_call.1} parent=1 // pred_region
      _
    $region5: #{tpu_custom_call.1} parent=1 // pred_fallthru
      _
    // Predicated region
    $region6: #{tpu_custom_call.1} parent=1 // pred_check
      _
    $region7: #{tpu_custom_call.1} parent=1 // pred_check_branch
      %20 = sbr.rel (0) target = $region9
    $region8: #{tpu_custom_call.1} parent=1 // pred_region
      %s22 = ssub.s32 32, 32
      %23 = vsyncadd [#allocation3], %s22
      %s25 = sshll.u32 [#allocation2], 4
      %s26 = int_to_ptr.vmem [resolvable:$true] %s25
      %28 = dma.hbm_to_vmem [thread:$0]  %s1, 32, %s26, [#allocation3]
    $region9: #{tpu_custom_call.1} parent=1 // pred_fallthru
      _
    // Predicated region
    $region10: #{tpu_custom_call.1} parent=1 // pred_check
      _
    $region11: #{tpu_custom_call.1} parent=1 // pred_check_branch
      %30 = sbr.rel (0) target = $region13
    $region12: #{tpu_custom_call.1} parent=1 // pred_region
      %s32 = ssub.s32 64, 64
      %33 = vsyncadd [#allocation5], %s32
      %s35 = sshll.u32 [#allocation4], 4
      %s36 = int_to_ptr.vmem [resolvable:$true] %s35
      %38 = dma.hbm_to_vmem [thread:$0]  %s2, 64, %s36, [#allocation5]
    $region13: #{tpu_custom_call.1} parent=1 // pred_fallthru
      _
    // Predicated region
    $region14: #{tpu_custom_call.1} parent=1 // pred_check
      _
    $region15: #{tpu_custom_call.1} parent=1 // pred_check_branch
      %40 = sbr.rel (0) target = $region17
    $region16: #{tpu_custom_call.1} parent=1 // pred_region
      _
    $region17: #{tpu_custom_call.1} parent=1 // pred_fallthru
      _
    // Predicated region
    $region18: #{tpu_custom_call.1} parent=1 // pred_check
      _
    $region19: #{tpu_custom_call.1} parent=1 // pred_check_branch
      %42 = sbr.rel (0) target = $region21
    $region20: #{tpu_custom_call.1} parent=1 // pred_region
      %s44 = ssub.s32 16, 16
      %45 = vsyncadd [#allocation5], %s44
      %s47 = sshll.u32 [#allocation6], 4
      %s48 = int_to_ptr.vmem [resolvable:$true] %s47
      %50 = dma.hbm_to_vmem [thread:$0]  %s4, 16, %s48, [#allocation5]
    $region21: #{tpu_custom_call.1} parent=1 // pred_fallthru
      _
    // Predicated region
    $region22: #{tpu_custom_call.1} parent=1 // pred_check
      _
    $region23: #{tpu_custom_call.1} parent=1 // pred_check_branch
      %52 = sbr.rel (0) target = $region25
    $region24: #{tpu_custom_call.1} parent=1 // pred_region
      _
    $region25: #{tpu_custom_call.1} parent=1 // pred_fallthru
      _
    // Predicated region
    $region26: #{tpu_custom_call.1} parent=1 // pred_check
      _
    $region27: #{tpu_custom_call.1} parent=1 // pred_check_branch
      %54 = sbr.rel (0) target = $region29
    $region28: #{tpu_custom_call.1} parent=1 // pred_region
      %s56 = ssub.s32 16, 16
      %57 = vsyncadd [#allocation8], %s56
      %s59 = sshll.u32 [#allocation7], 4
      %s60 = int_to_ptr.vmem [resolvable:$true] %s59
      %62 = dma.hbm_to_vmem [thread:$0]  %s6, 16, %s60, [#allocation8]
    $region29: #{tpu_custom_call.1} parent=1 // pred_fallthru
      _
    // Predicated region
    $region30: #{tpu_custom_call.1} parent=1 // pred_check
      _
    $region31: #{tpu_custom_call.1} parent=1 // pred_check_branch
      %64 = sbr.rel (0) target = $region33
    $region32: #{tpu_custom_call.1} parent=1 // pred_region
      _
    $region33: #{tpu_custom_call.1} parent=1 // pred_fallthru
      _
    // Predicated region
    $region34: #{tpu_custom_call.1} parent=1 // pred_check
      _
    $region35: #{tpu_custom_call.1} parent=1 // pred_check_branch
      %66 = sbr.rel (0) target = $region37
    $region36: #{tpu_custom_call.1} parent=1 // pred_region
      _
    $region37: #{tpu_custom_call.1} parent=1 // pred_fallthru
      _
    // Predicated region
    $region38: #{tpu_custom_call.1} parent=1 // pred_check
      _
    $region39: #{tpu_custom_call.1} parent=1 // pred_check_branch
      %68 = sbr.rel (0) target = $region41
    $region40: #{tpu_custom_call.1} parent=1 // pred_region
      %69 = dma.done [#allocation3], 32
    $region41: #{tpu_custom_call.1} parent=1 // pred_fallthru
      _
    // Predicated region
    $region42: #{tpu_custom_call.1} parent=1 // pred_check
      _
    $region43: #{tpu_custom_call.1} parent=1 // pred_check_branch
      %71 = sbr.rel (0) target = $region45
    $region44: #{tpu_custom_call.1} parent=1 // pred_region
      %72 = dma.done [#allocation5], 64
    $region45: #{tpu_custom_call.1} parent=1 // pred_fallthru
      _
    // Predicated region
    $region46: #{tpu_custom_call.1} parent=1 // pred_check
      _
    $region47: #{tpu_custom_call.1} parent=1 // pred_check_branch
      %74 = sbr.rel (0) target = $region49
    $region48: #{tpu_custom_call.1} parent=1 // pred_region
      %75 = dma.done [#allocation5], 16
    $region49: #{tpu_custom_call.1} parent=1 // pred_fallthru
      _
    // Predicated region
    $region50: #{tpu_custom_call.1} parent=1 // pred_check
      _
    $region51: #{tpu_custom_call.1} parent=1 // pred_check_branch
      %77 = sbr.rel (0) target = $region53
    $region52: #{tpu_custom_call.1} parent=1 // pred_region
      %78 = dma.done [#allocation8], 16
    $region53: #{tpu_custom_call.1} parent=1 // pred_fallthru
      _
    %v79 = vld [vmem:[#allocation4] sm:$0xf]
    %v80 = vld [vmem:[%s3] sm:$0xff]
    %v81 = vld [vmem:[%s3 + $0x8] sm:$0xff]
    %v82 = vld [vmem:[%s3 + $0x10] sm:$0xff]
    %v83 = vld [vmem:[%s3 + $0x18] sm:$0xff]
    %v84 = vld [vmem:[%s5] sm:$0xff]
    %v85 = vld [vmem:[%s5 + $0x8] sm:$0xff]
    %v86 = vld [vmem:[%s5 + $0x10] sm:$0xff]
    %v87 = vld [vmem:[%s5 + $0x18] sm:$0xff]
    %v88 = vld [vmem:[%s7] sm:$0xff]
    %v89 = vld [vmem:[%s7 + $0x8] sm:$0xff]
    %v90 = vld [vmem:[%s7 + $0x10] sm:$0xff]
    %v91 = vld [vmem:[%s7 + $0x18] sm:$0xff]
    %v92 = vld [vmem:[#allocation6] sm:$0x1]
    %v93 = vld [vmem:[#allocation7] sm:$0x1]
    %v95 = vlaneseq
    %v96 = vshrl.u32 %v95, 7
    %v97 = vsub.s32 0, %v96
    %v98 = vrot.slane %v93, %v97
    %v100 = vld [vmem:[%s8] sm:$0x1]
    %v101 = vld [vmem:[%s0] sm:$0xff]
    %v102 = vld [vmem:[%s0 + $0x8] sm:$0xff]
    %v104 = vlaneseq
    %v105 = vshrl.u32 %v104, 7
    %v106 = vsub.s32 0, %v105
    %v107 = vrot.slane %v92, %v106
    %vm109 = vcmask 31744
    %v111 = vsel %vm109, %v101, 0
    %v114 = vsel %vm109, %v102, 0
    %vm116 = vcmask 1043456
    %v118 = vsel %vm116, %v79, 0
    %120 = vmatprep.subr.mxu0 0.0
    %121 = vmatpush1.msra.mxu0 0.0
    %122 = vmatprep.subr.mxu0 0.0
    %123 = vmatpush1.msra.mxu0 0.0
    %124 = vmatprep.subr.mxu0 0.0
    %125 = vmatpush1.msra.mxu0 0.0
    %126 = vmatprep.subr.mxu0 0.0
    %127 = vmatpush1.msra.mxu0 0.0
    %128 = vmatprep.subr.mxu0 0.0
    %129 = vmatpush1.msra.mxu0 0.0
    %130 = vmatprep.subr.mxu0 0.0
    %131 = vmatpush1.msra.mxu0 0.0
    %132 = vmatprep.subr.mxu0 0.0
    %133 = vmatpush1.msra.mxu0 0.0
    %134 = vmatprep.subr.mxu0 0.0
    %135 = vmatpush1.msra.mxu0 0.0
    %136 = vmatprep.subr.mxu0 0.0
    %137 = vmatpush1.msra.mxu0 0.0
    %138 = vmatprep.subr.mxu0 0.0
    %139 = vmatpush1.msra.mxu0 0.0
    %140 = vmatprep.subr.mxu0 0.0
    %141 = vmatpush1.msra.mxu0 0.0
    %142 = vmatprep.subr.mxu0 0.0
    %143 = vmatpush1.msra.mxu0 0.0
    %144 = vmatprep.subr.mxu0 0.0
    %145 = vmatpush1.msra.mxu0 0.0
    %146 = vmatprep.subr.mxu0 0.0
    %147 = vmatpush1.msra.mxu0 0.0
    %148 = vmatprep.subr.mxu0 0.0
    %149 = vmatpush1.msra.mxu0 0.0
    %150 = vmatprep.subr.mxu0 0.0
    %151 = vmatpush1.msra.mxu0 %v118
    %152 = vmatprep.subr.mxu0 0.0
    %153 = vmatpush2.msra.mxu0 0.0
    %154 = vmatprep.subr.mxu0 0.0
    %155 = vmatpush2.msra.mxu0 0.0
    %156 = vmatprep.subr.mxu0 0.0
    %157 = vmatpush2.msra.mxu0 0.0
    %158 = vmatprep.subr.mxu0 0.0
    %159 = vmatpush2.msra.mxu0 0.0
    %160 = vmatprep.subr.mxu0 0.0
    %161 = vmatpush2.msra.mxu0 0.0
    %162 = vmatprep.subr.mxu0 0.0
    %163 = vmatpush2.msra.mxu0 0.0
    %164 = vmatprep.subr.mxu0 0.0
    %165 = vmatpush2.msra.mxu0 0.0
    %166 = vmatprep.subr.mxu0 0.0
    %167 = vmatpush2.msra.mxu0 0.0
    %168 = vmatprep.subr.mxu0 0.0
    %169 = vmatpush2.msra.mxu0 0.0
    %170 = vmatprep.subr.mxu0 0.0
    %171 = vmatpush2.msra.mxu0 0.0
    %172 = vmatprep.subr.mxu0 0.0
    %173 = vmatpush2.msra.mxu0 0.0
    %174 = vmatprep.subr.mxu0 0.0
    %175 = vmatpush2.msra.mxu0 0.0
    %176 = vmatprep.subr.mxu0 0.0
    %177 = vmatpush2.msra.mxu0 0.0
    %178 = vmatprep.subr.mxu0 0.0
    %179 = vmatpush2.msra.mxu0 0.0
    %180 = vmatprep.subr.mxu0 0.0
    %181 = vmatpush2.msra.mxu0 0.0
    %182 = vmatprep.subr.mxu0 0.0
    %183 = vmatpush2.msra.mxu0 0.0
    %184 = vmatprep.mubr.f32.mxu0 0.0
    %185 = vmatmul.mubr.f32.gmra.mxu0 %v111
    %v186 = vpop.f32.mrf.mxu0
    %v187 = vadd.f32 %v107, %v186
    %v188 = vpop.f32.mrf.mxu0
    %189 = vmatprep.mubr.f32.mxu0 0.0
    %190 = vmatmul.mubr.f32.gmra.mxu0 %v114
    %v191 = vpop.f32.mrf.mxu0
    %v192 = vadd.f32 %v107, %v191
    %v193 = vpop.f32.mrf.mxu0
    %194 = vdwg.mxu0
    %v195 = vld [vmem:[#allocation2] sm:$0x3]
    %vm196 = vcmask 261120
    %v198 = vsel %vm196, %v195, 0
    %200 = vmatprep.subr.mxu0 0.0
    %201 = vmatpush1.msra.mxu0 0.0
    %202 = vmatprep.subr.mxu0 0.0
    %203 = vmatpush1.msra.mxu0 0.0
    %204 = vmatprep.subr.mxu0 0.0
    %205 = vmatpush1.msra.mxu0 0.0
    %206 = vmatprep.subr.mxu0 0.0
    %207 = vmatpush1.msra.mxu0 0.0
    %208 = vmatprep.subr.mxu0 0.0
    %209 = vmatpush1.msra.mxu0 0.0
    %210 = vmatprep.subr.mxu0 0.0
    %211 = vmatpush1.msra.mxu0 0.0
    %212 = vmatprep.subr.mxu0 0.0
    %213 = vmatpush1.msra.mxu0 0.0
    %214 = vmatprep.subr.mxu0 0.0
    %215 = vmatpush1.msra.mxu0 0.0
    %216 = vmatprep.subr.mxu0 0.0
    %217 = vmatpush1.msra.mxu0 0.0
    %218 = vmatprep.subr.mxu0 0.0
    %219 = vmatpush1.msra.mxu0 0.0
    %220 = vmatprep.subr.mxu0 0.0
    %221 = vmatpush1.msra.mxu0 0.0
    %222 = vmatprep.subr.mxu0 0.0
    %223 = vmatpush1.msra.mxu0 0.0
    %224 = vmatprep.subr.mxu0 0.0
    %225 = vmatpush1.msra.mxu0 %v83
    %226 = vmatprep.subr.mxu0 0.0
    %227 = vmatpush1.msra.mxu0 %v82
    %228 = vmatprep.subr.mxu0 0.0
    %229 = vmatpush1.msra.mxu0 %v81
    %230 = vmatprep.subr.mxu0 0.0
    %231 = vmatpush1.msra.mxu0 %v80
    %232 = vmatprep.subr.mxu0 0.0
    %233 = vmatpush2.msra.mxu0 0.0
    %234 = vmatprep.subr.mxu0 0.0
    %235 = vmatpush2.msra.mxu0 0.0
    %236 = vmatprep.subr.mxu0 0.0
    %237 = vmatpush2.msra.mxu0 0.0
    %238 = vmatprep.subr.mxu0 0.0
    %239 = vmatpush2.msra.mxu0 0.0
    %240 = vmatprep.subr.mxu0 0.0
    %241 = vmatpush2.msra.mxu0 0.0
    %242 = vmatprep.subr.mxu0 0.0
    %243 = vmatpush2.msra.mxu0 0.0
    %244 = vmatprep.subr.mxu0 0.0
    %245 = vmatpush2.msra.mxu0 0.0
    %246 = vmatprep.subr.mxu0 0.0
    %247 = vmatpush2.msra.mxu0 0.0
    %248 = vmatprep.subr.mxu0 0.0
    %249 = vmatpush2.msra.mxu0 0.0
    %250 = vmatprep.subr.mxu0 0.0
    %251 = vmatpush2.msra.mxu0 0.0
    %252 = vmatprep.subr.mxu0 0.0
    %253 = vmatpush2.msra.mxu0 0.0
    %254 = vmatprep.subr.mxu0 0.0
    %255 = vmatpush2.msra.mxu0 0.0
    %256 = vmatprep.subr.mxu0 0.0
    %257 = vmatpush2.msra.mxu0 0.0
    %258 = vmatprep.subr.mxu0 0.0
    %259 = vmatpush2.msra.mxu0 0.0
    %260 = vmatprep.subr.mxu0 0.0
    %261 = vmatpush2.msra.mxu0 0.0
    %262 = vmatprep.subr.mxu0 0.0
    %263 = vmatpush2.msra.mxu0 0.0
    %264 = vmatprep.mubr.f32.mxu0 0.0
    %265 = vmatmul.mubr.f32.gmra.mxu0 %v198
    %v266 = vpop.f32.mrf.mxu0
    %v267 = vadd.f32 0.0, %v266
    %v268 = vpop.f32.mrf.mxu0
    %269 = vdwg.mxu0
    %v270 = vadd.f32 %v187, %v267
    %v271 = vtanh.pop %v270
    %v273 = vsel %vm196, %v271, 0
    %275 = vmatprep.subr.mxu0 0.0
    %276 = vmatpush1.msra.mxu0 0.0
    %277 = vmatprep.subr.mxu0 0.0
    %278 = vmatpush1.msra.mxu0 0.0
    %279 = vmatprep.subr.mxu0 0.0
    %280 = vmatpush1.msra.mxu0 0.0
    %281 = vmatprep.subr.mxu0 0.0
    %282 = vmatpush1.msra.mxu0 0.0
    %283 = vmatprep.subr.mxu0 0.0
    %284 = vmatpush1.msra.mxu0 0.0
    %285 = vmatprep.subr.mxu0 0.0
    %286 = vmatpush1.msra.mxu0 0.0
    %287 = vmatprep.subr.mxu0 0.0
    %288 = vmatpush1.msra.mxu0 0.0
    %289 = vmatprep.subr.mxu0 0.0
    %290 = vmatpush1.msra.mxu0 0.0
    %291 = vmatprep.subr.mxu0 0.0
    %292 = vmatpush1.msra.mxu0 0.0
    %293 = vmatprep.subr.mxu0 0.0
    %294 = vmatpush1.msra.mxu0 0.0
    %295 = vmatprep.subr.mxu0 0.0
    %296 = vmatpush1.msra.mxu0 0.0
    %297 = vmatprep.subr.mxu0 0.0
    %298 = vmatpush1.msra.mxu0 0.0
    %299 = vmatprep.subr.mxu0 0.0
    %300 = vmatpush1.msra.mxu0 %v83
    %301 = vmatprep.subr.mxu0 0.0
    %302 = vmatpush1.msra.mxu0 %v82
    %303 = vmatprep.subr.mxu0 0.0
    %304 = vmatpush1.msra.mxu0 %v81
    %305 = vmatprep.subr.mxu0 0.0
    %306 = vmatpush1.msra.mxu0 %v80
    %307 = vmatprep.subr.mxu0 0.0
    %308 = vmatpush2.msra.mxu0 0.0
    %309 = vmatprep.subr.mxu0 0.0
    %310 = vmatpush2.msra.mxu0 0.0
    %311 = vmatprep.subr.mxu0 0.0
    %312 = vmatpush2.msra.mxu0 0.0
    %313 = vmatprep.subr.mxu0 0.0
    %314 = vmatpush2.msra.mxu0 0.0
    %315 = vmatprep.subr.mxu0 0.0
    %316 = vmatpush2.msra.mxu0 0.0
    %317 = vmatprep.subr.mxu0 0.0
    %318 = vmatpush2.msra.mxu0 0.0
    %319 = vmatprep.subr.mxu0 0.0
    %320 = vmatpush2.msra.mxu0 0.0
    %321 = vmatprep.subr.mxu0 0.0
    %322 = vmatpush2.msra.mxu0 0.0
    %323 = vmatprep.subr.mxu0 0.0
    %324 = vmatpush2.msra.mxu0 0.0
    %325 = vmatprep.subr.mxu0 0.0
    %326 = vmatpush2.msra.mxu0 0.0
    %327 = vmatprep.subr.mxu0 0.0
    %328 = vmatpush2.msra.mxu0 0.0
    %329 = vmatprep.subr.mxu0 0.0
    %330 = vmatpush2.msra.mxu0 0.0
    %331 = vmatprep.subr.mxu0 0.0
    %332 = vmatpush2.msra.mxu0 0.0
    %333 = vmatprep.subr.mxu0 0.0
    %334 = vmatpush2.msra.mxu0 0.0
    %335 = vmatprep.subr.mxu0 0.0
    %336 = vmatpush2.msra.mxu0 0.0
    %337 = vmatprep.subr.mxu0 0.0
    %338 = vmatpush2.msra.mxu0 0.0
    %339 = vmatprep.mubr.f32.mxu0 0.0
    %340 = vmatmul.mubr.f32.gmra.mxu0 %v273
    %v341 = vpop.f32.mrf.mxu0
    %v342 = vadd.f32 0.0, %v341
    %v343 = vpop.f32.mrf.mxu0
    %344 = vdwg.mxu0
    %v346 = vrot.slane %v342, 6
    %v348 = vadd.f32 %v187, %v346
    %v349 = vtanh.pop %v348
    %v351 = vrot.slane %v349, 2
    %v352 = vsel %vm196, %v351, 0
    %354 = vmatprep.subr.mxu0 0.0
    %355 = vmatpush1.msra.mxu0 0.0
    %356 = vmatprep.subr.mxu0 0.0
    %357 = vmatpush1.msra.mxu0 0.0
    %358 = vmatprep.subr.mxu0 0.0
    %359 = vmatpush1.msra.mxu0 0.0
    %360 = vmatprep.subr.mxu0 0.0
    %361 = vmatpush1.msra.mxu0 0.0
    %362 = vmatprep.subr.mxu0 0.0
    %363 = vmatpush1.msra.mxu0 0.0
    %364 = vmatprep.subr.mxu0 0.0
    %365 = vmatpush1.msra.mxu0 0.0
    %366 = vmatprep.subr.mxu0 0.0
    %367 = vmatpush1.msra.mxu0 0.0
    %368 = vmatprep.subr.mxu0 0.0
    %369 = vmatpush1.msra.mxu0 0.0
    %370 = vmatprep.subr.mxu0 0.0
    %371 = vmatpush1.msra.mxu0 0.0
    %372 = vmatprep.subr.mxu0 0.0
    %373 = vmatpush1.msra.mxu0 0.0
    %374 = vmatprep.subr.mxu0 0.0
    %375 = vmatpush1.msra.mxu0 0.0
    %376 = vmatprep.subr.mxu0 0.0
    %377 = vmatpush1.msra.mxu0 0.0
    %378 = vmatprep.subr.mxu0 0.0
    %379 = vmatpush1.msra.mxu0 %v83
    %380 = vmatprep.subr.mxu0 0.0
    %381 = vmatpush1.msra.mxu0 %v82
    %382 = vmatprep.subr.mxu0 0.0
    %383 = vmatpush1.msra.mxu0 %v81
    %384 = vmatprep.subr.mxu0 0.0
    %385 = vmatpush1.msra.mxu0 %v80
    %386 = vmatprep.subr.mxu0 0.0
    %387 = vmatpush2.msra.mxu0 0.0
    %388 = vmatprep.subr.mxu0 0.0
    %389 = vmatpush2.msra.mxu0 0.0
    %390 = vmatprep.subr.mxu0 0.0
    %391 = vmatpush2.msra.mxu0 0.0
    %392 = vmatprep.subr.mxu0 0.0
    %393 = vmatpush2.msra.mxu0 0.0
    %394 = vmatprep.subr.mxu0 0.0
    %395 = vmatpush2.msra.mxu0 0.0
    %396 = vmatprep.subr.mxu0 0.0
    %397 = vmatpush2.msra.mxu0 0.0
    %398 = vmatprep.subr.mxu0 0.0
    %399 = vmatpush2.msra.mxu0 0.0
    %400 = vmatprep.subr.mxu0 0.0
    %401 = vmatpush2.msra.mxu0 0.0
    %402 = vmatprep.subr.mxu0 0.0
    %403 = vmatpush2.msra.mxu0 0.0
    %404 = vmatprep.subr.mxu0 0.0
    %405 = vmatpush2.msra.mxu0 0.0
    %406 = vmatprep.subr.mxu0 0.0
    %407 = vmatpush2.msra.mxu0 0.0
    %408 = vmatprep.subr.mxu0 0.0
    %409 = vmatpush2.msra.mxu0 0.0
    %410 = vmatprep.subr.mxu0 0.0
    %411 = vmatpush2.msra.mxu0 0.0
    %412 = vmatprep.subr.mxu0 0.0
    %413 = vmatpush2.msra.mxu0 0.0
    %414 = vmatprep.subr.mxu0 0.0
    %415 = vmatpush2.msra.mxu0 0.0
    %416 = vmatprep.subr.mxu0 0.0
    %417 = vmatpush2.msra.mxu0 0.0
    %418 = vmatprep.mubr.f32.mxu0 0.0
    %419 = vmatmul.mubr.f32.gmra.mxu0 %v352
    %v420 = vpop.f32.mrf.mxu0
    %v421 = vadd.f32 0.0, %v420
    %v422 = vpop.f32.mrf.mxu0
    %423 = vdwg.mxu0
    %v425 = vrot.slane %v421, 4
    %v427 = vadd.f32 %v187, %v425
    %v428 = vtanh.pop %v427
    %v430 = vrot.slane %v428, 4
    %v431 = vsel %vm196, %v430, 0
    %433 = vmatprep.subr.mxu0 0.0
    %434 = vmatpush1.msra.mxu0 0.0
    %435 = vmatprep.subr.mxu0 0.0
    %436 = vmatpush1.msra.mxu0 0.0
    %437 = vmatprep.subr.mxu0 0.0
    %438 = vmatpush1.msra.mxu0 0.0
    %439 = vmatprep.subr.mxu0 0.0
    %440 = vmatpush1.msra.mxu0 0.0
    %441 = vmatprep.subr.mxu0 0.0
    %442 = vmatpush1.msra.mxu0 0.0
    %443 = vmatprep.subr.mxu0 0.0
    %444 = vmatpush1.msra.mxu0 0.0
    %445 = vmatprep.subr.mxu0 0.0
    %446 = vmatpush1.msra.mxu0 0.0
    %447 = vmatprep.subr.mxu0 0.0
    %448 = vmatpush1.msra.mxu0 0.0
    %449 = vmatprep.subr.mxu0 0.0
    %450 = vmatpush1.msra.mxu0 0.0
    %451 = vmatprep.subr.mxu0 0.0
    %452 = vmatpush1.msra.mxu0 0.0
    %453 = vmatprep.subr.mxu0 0.0
    %454 = vmatpush1.msra.mxu0 0.0
    %455 = vmatprep.subr.mxu0 0.0
    %456 = vmatpush1.msra.mxu0 0.0
    %457 = vmatprep.subr.mxu0 0.0
    %458 = vmatpush1.msra.mxu0 %v83
    %459 = vmatprep.subr.mxu0 0.0
    %460 = vmatpush1.msra.mxu0 %v82
    %461 = vmatprep.subr.mxu0 0.0
    %462 = vmatpush1.msra.mxu0 %v81
    %463 = vmatprep.subr.mxu0 0.0
    %464 = vmatpush1.msra.mxu0 %v80
    %465 = vmatprep.subr.mxu0 0.0
    %466 = vmatpush2.msra.mxu0 0.0
    %467 = vmatprep.subr.mxu0 0.0
    %468 = vmatpush2.msra.mxu0 0.0
    %469 = vmatprep.subr.mxu0 0.0
    %470 = vmatpush2.msra.mxu0 0.0
    %471 = vmatprep.subr.mxu0 0.0
    %472 = vmatpush2.msra.mxu0 0.0
    %473 = vmatprep.subr.mxu0 0.0
    %474 = vmatpush2.msra.mxu0 0.0
    %475 = vmatprep.subr.mxu0 0.0
    %476 = vmatpush2.msra.mxu0 0.0
    %477 = vmatprep.subr.mxu0 0.0
    %478 = vmatpush2.msra.mxu0 0.0
    %479 = vmatprep.subr.mxu0 0.0
    %480 = vmatpush2.msra.mxu0 0.0
    %481 = vmatprep.subr.mxu0 0.0
    %482 = vmatpush2.msra.mxu0 0.0
    %483 = vmatprep.subr.mxu0 0.0
    %484 = vmatpush2.msra.mxu0 0.0
    %485 = vmatprep.subr.mxu0 0.0
    %486 = vmatpush2.msra.mxu0 0.0
    %487 = vmatprep.subr.mxu0 0.0
    %488 = vmatpush2.msra.mxu0 0.0
    %489 = vmatprep.subr.mxu0 0.0
    %490 = vmatpush2.msra.mxu0 0.0
    %491 = vmatprep.subr.mxu0 0.0
    %492 = vmatpush2.msra.mxu0 0.0
    %493 = vmatprep.subr.mxu0 0.0
    %494 = vmatpush2.msra.mxu0 0.0
    %495 = vmatprep.subr.mxu0 0.0
    %496 = vmatpush2.msra.mxu0 0.0
    %497 = vmatprep.mubr.f32.mxu0 0.0
    %498 = vmatmul.mubr.f32.gmra.mxu0 %v431
    %v499 = vpop.f32.mrf.mxu0
    %v500 = vadd.f32 0.0, %v499
    %v501 = vpop.f32.mrf.mxu0
    %502 = vdwg.mxu0
    %v504 = vrot.slane %v500, 2
    %v506 = vadd.f32 %v187, %v504
    %v507 = vtanh.pop %v506
    %v509 = vrot.slane %v507, 6
    %v510 = vsel %vm196, %v509, 0
    %512 = vmatprep.subr.mxu0 0.0
    %513 = vmatpush1.msra.mxu0 0.0
    %514 = vmatprep.subr.mxu0 0.0
    %515 = vmatpush1.msra.mxu0 0.0
    %516 = vmatprep.subr.mxu0 0.0
    %517 = vmatpush1.msra.mxu0 0.0
    %518 = vmatprep.subr.mxu0 0.0
    %519 = vmatpush1.msra.mxu0 0.0
    %520 = vmatprep.subr.mxu0 0.0
    %521 = vmatpush1.msra.mxu0 0.0
    %522 = vmatprep.subr.mxu0 0.0
    %523 = vmatpush1.msra.mxu0 0.0
    %524 = vmatprep.subr.mxu0 0.0
    %525 = vmatpush1.msra.mxu0 0.0
    %526 = vmatprep.subr.mxu0 0.0
    %527 = vmatpush1.msra.mxu0 0.0
    %528 = vmatprep.subr.mxu0 0.0
    %529 = vmatpush1.msra.mxu0 0.0
    %530 = vmatprep.subr.mxu0 0.0
    %531 = vmatpush1.msra.mxu0 0.0
    %532 = vmatprep.subr.mxu0 0.0
    %533 = vmatpush1.msra.mxu0 0.0
    %534 = vmatprep.subr.mxu0 0.0
    %535 = vmatpush1.msra.mxu0 0.0
    %536 = vmatprep.subr.mxu0 0.0
    %537 = vmatpush1.msra.mxu0 %v83
    %538 = vmatprep.subr.mxu0 0.0
    %539 = vmatpush1.msra.mxu0 %v82
    %540 = vmatprep.subr.mxu0 0.0
    %541 = vmatpush1.msra.mxu0 %v81
    %542 = vmatprep.subr.mxu0 0.0
    %543 = vmatpush1.msra.mxu0 %v80
    %544 = vmatprep.subr.mxu0 0.0
    %545 = vmatpush2.msra.mxu0 0.0
    %546 = vmatprep.subr.mxu0 0.0
    %547 = vmatpush2.msra.mxu0 0.0
    %548 = vmatprep.subr.mxu0 0.0
    %549 = vmatpush2.msra.mxu0 0.0
    %550 = vmatprep.subr.mxu0 0.0
    %551 = vmatpush2.msra.mxu0 0.0
    %552 = vmatprep.subr.mxu0 0.0
    %553 = vmatpush2.msra.mxu0 0.0
    %554 = vmatprep.subr.mxu0 0.0
    %555 = vmatpush2.msra.mxu0 0.0
    %556 = vmatprep.subr.mxu0 0.0
    %557 = vmatpush2.msra.mxu0 0.0
    %558 = vmatprep.subr.mxu0 0.0
    %559 = vmatpush2.msra.mxu0 0.0
    %560 = vmatprep.subr.mxu0 0.0
    %561 = vmatpush2.msra.mxu0 0.0
    %562 = vmatprep.subr.mxu0 0.0
    %563 = vmatpush2.msra.mxu0 0.0
    %564 = vmatprep.subr.mxu0 0.0
    %565 = vmatpush2.msra.mxu0 0.0
    %566 = vmatprep.subr.mxu0 0.0
    %567 = vmatpush2.msra.mxu0 0.0
    %568 = vmatprep.subr.mxu0 0.0
    %569 = vmatpush2.msra.mxu0 0.0
    %570 = vmatprep.subr.mxu0 0.0
    %571 = vmatpush2.msra.mxu0 0.0
    %572 = vmatprep.subr.mxu0 0.0
    %573 = vmatpush2.msra.mxu0 0.0
    %574 = vmatprep.subr.mxu0 0.0
    %575 = vmatpush2.msra.mxu0 0.0
    %576 = vmatprep.mubr.f32.mxu0 0.0
    %577 = vmatmul.mubr.f32.gmra.mxu0 %v510
    %v578 = vpop.f32.mrf.mxu0
    %v579 = vadd.f32 0.0, %v578
    %v580 = vpop.f32.mrf.mxu0
    %581 = vdwg.mxu0
    %v582 = vadd.f32 %v192, %v579
    %v583 = vtanh.pop %v582
    %v585 = vsel %vm196, %v583, 0
    %587 = vmatprep.subr.mxu0 0.0
    %588 = vmatpush1.msra.mxu0 0.0
    %589 = vmatprep.subr.mxu0 0.0
    %590 = vmatpush1.msra.mxu0 0.0
    %591 = vmatprep.subr.mxu0 0.0
    %592 = vmatpush1.msra.mxu0 0.0
    %593 = vmatprep.subr.mxu0 0.0
    %594 = vmatpush1.msra.mxu0 0.0
    %595 = vmatprep.subr.mxu0 0.0
    %596 = vmatpush1.msra.mxu0 0.0
    %597 = vmatprep.subr.mxu0 0.0
    %598 = vmatpush1.msra.mxu0 0.0
    %599 = vmatprep.subr.mxu0 0.0
    %600 = vmatpush1.msra.mxu0 0.0
    %601 = vmatprep.subr.mxu0 0.0
    %602 = vmatpush1.msra.mxu0 0.0
    %603 = vmatprep.subr.mxu0 0.0
    %604 = vmatpush1.msra.mxu0 0.0
    %605 = vmatprep.subr.mxu0 0.0
    %606 = vmatpush1.msra.mxu0 0.0
    %607 = vmatprep.subr.mxu0 0.0
    %608 = vmatpush1.msra.mxu0 0.0
    %609 = vmatprep.subr.mxu0 0.0
    %610 = vmatpush1.msra.mxu0 0.0
    %611 = vmatprep.subr.mxu0 0.0
    %612 = vmatpush1.msra.mxu0 %v83
    %613 = vmatprep.subr.mxu0 0.0
    %614 = vmatpush1.msra.mxu0 %v82
    %615 = vmatprep.subr.mxu0 0.0
    %616 = vmatpush1.msra.mxu0 %v81
    %617 = vmatprep.subr.mxu0 0.0
    %618 = vmatpush1.msra.mxu0 %v80
    %619 = vmatprep.subr.mxu0 0.0
    %620 = vmatpush2.msra.mxu0 0.0
    %621 = vmatprep.subr.mxu0 0.0
    %622 = vmatpush2.msra.mxu0 0.0
    %623 = vmatprep.subr.mxu0 0.0
    %624 = vmatpush2.msra.mxu0 0.0
    %625 = vmatprep.subr.mxu0 0.0
    %626 = vmatpush2.msra.mxu0 0.0
    %627 = vmatprep.subr.mxu0 0.0
    %628 = vmatpush2.msra.mxu0 0.0
    %629 = vmatprep.subr.mxu0 0.0
    %630 = vmatpush2.msra.mxu0 0.0
    %631 = vmatprep.subr.mxu0 0.0
    %632 = vmatpush2.msra.mxu0 0.0
    %633 = vmatprep.subr.mxu0 0.0
    %634 = vmatpush2.msra.mxu0 0.0
    %635 = vmatprep.subr.mxu0 0.0
    %636 = vmatpush2.msra.mxu0 0.0
    %637 = vmatprep.subr.mxu0 0.0
    %638 = vmatpush2.msra.mxu0 0.0
    %639 = vmatprep.subr.mxu0 0.0
    %640 = vmatpush2.msra.mxu0 0.0
    %641 = vmatprep.subr.mxu0 0.0
    %642 = vmatpush2.msra.mxu0 0.0
    %643 = vmatprep.subr.mxu0 0.0
    %644 = vmatpush2.msra.mxu0 0.0
    %645 = vmatprep.subr.mxu0 0.0
    %646 = vmatpush2.msra.mxu0 0.0
    %647 = vmatprep.subr.mxu0 0.0
    %648 = vmatpush2.msra.mxu0 0.0
    %649 = vmatprep.subr.mxu0 0.0
    %650 = vmatpush2.msra.mxu0 0.0
    %651 = vmatprep.mubr.f32.mxu0 0.0
    %652 = vmatmul.mubr.f32.gmra.mxu0 %v585
    %v653 = vpop.f32.mrf.mxu0
    %v654 = vadd.f32 0.0, %v653
    %v655 = vpop.f32.mrf.mxu0
    %656 = vdwg.mxu0
    %v658 = vrot.slane %v654, 6
    %v660 = vadd.f32 %v192, %v658
    %v661 = vtanh.pop %v660
    %v663 = vrot.slane %v661, 2
    %v664 = vsel %vm196, %v663, 0
    %666 = vmatprep.subr.mxu0 0.0
    %667 = vmatpush1.msra.mxu0 0.0
    %668 = vmatprep.subr.mxu0 0.0
    %669 = vmatpush1.msra.mxu0 0.0
    %670 = vmatprep.subr.mxu0 0.0
    %671 = vmatpush1.msra.mxu0 0.0
    %672 = vmatprep.subr.mxu0 0.0
    %673 = vmatpush1.msra.mxu0 0.0
    %674 = vmatprep.subr.mxu0 0.0
    %675 = vmatpush1.msra.mxu0 0.0
    %676 = vmatprep.subr.mxu0 0.0
    %677 = vmatpush1.msra.mxu0 0.0
    %678 = vmatprep.subr.mxu0 0.0
    %679 = vmatpush1.msra.mxu0 0.0
    %680 = vmatprep.subr.mxu0 0.0
    %681 = vmatpush1.msra.mxu0 0.0
    %682 = vmatprep.subr.mxu0 0.0
    %683 = vmatpush1.msra.mxu0 0.0
    %684 = vmatprep.subr.mxu0 0.0
    %685 = vmatpush1.msra.mxu0 0.0
    %686 = vmatprep.subr.mxu0 0.0
    %687 = vmatpush1.msra.mxu0 0.0
    %688 = vmatprep.subr.mxu0 0.0
    %689 = vmatpush1.msra.mxu0 0.0
    %690 = vmatprep.subr.mxu0 0.0
    %691 = vmatpush1.msra.mxu0 %v83
    %692 = vmatprep.subr.mxu0 0.0
    %693 = vmatpush1.msra.mxu0 %v82
    %694 = vmatprep.subr.mxu0 0.0
    %695 = vmatpush1.msra.mxu0 %v81
    %696 = vmatprep.subr.mxu0 0.0
    %697 = vmatpush1.msra.mxu0 %v80
    %698 = vmatprep.subr.mxu0 0.0
    %699 = vmatpush2.msra.mxu0 0.0
    %700 = vmatprep.subr.mxu0 0.0
    %701 = vmatpush2.msra.mxu0 0.0
    %702 = vmatprep.subr.mxu0 0.0
    %703 = vmatpush2.msra.mxu0 0.0
    %704 = vmatprep.subr.mxu0 0.0
    %705 = vmatpush2.msra.mxu0 0.0
    %706 = vmatprep.subr.mxu0 0.0
    %707 = vmatpush2.msra.mxu0 0.0
    %708 = vmatprep.subr.mxu0 0.0
    %709 = vmatpush2.msra.mxu0 0.0
    %710 = vmatprep.subr.mxu0 0.0
    %711 = vmatpush2.msra.mxu0 0.0
    %712 = vmatprep.subr.mxu0 0.0
    %713 = vmatpush2.msra.mxu0 0.0
    %714 = vmatprep.subr.mxu0 0.0
    %715 = vmatpush2.msra.mxu0 0.0
    %716 = vmatprep.subr.mxu0 0.0
    %717 = vmatpush2.msra.mxu0 0.0
    %718 = vmatprep.subr.mxu0 0.0
    %719 = vmatpush2.msra.mxu0 0.0
    %720 = vmatprep.subr.mxu0 0.0
    %721 = vmatpush2.msra.mxu0 0.0
    %722 = vmatprep.subr.mxu0 0.0
    %723 = vmatpush2.msra.mxu0 0.0
    %724 = vmatprep.subr.mxu0 0.0
    %725 = vmatpush2.msra.mxu0 0.0
    %726 = vmatprep.subr.mxu0 0.0
    %727 = vmatpush2.msra.mxu0 0.0
    %728 = vmatprep.subr.mxu0 0.0
    %729 = vmatpush2.msra.mxu0 0.0
    %730 = vmatprep.mubr.f32.mxu0 0.0
    %731 = vmatmul.mubr.f32.gmra.mxu0 %v664
    %v732 = vpop.f32.mrf.mxu0
    %v733 = vadd.f32 0.0, %v732
    %v734 = vpop.f32.mrf.mxu0
    %735 = vdwg.mxu0
    %v737 = vrot.slane %v733, 4
    %v739 = vadd.f32 %v192, %v737
    %v740 = vtanh.pop %v739
    %v742 = vrot.slane %v740, 4
    %v743 = vsel %vm196, %v742, 0
    %745 = vmatprep.subr.mxu0 0.0
    %746 = vmatpush1.msra.mxu0 0.0
    %747 = vmatprep.subr.mxu0 0.0
    %748 = vmatpush1.msra.mxu0 0.0
    %749 = vmatprep.subr.mxu0 0.0
    %750 = vmatpush1.msra.mxu0 0.0
    %751 = vmatprep.subr.mxu0 0.0
    %752 = vmatpush1.msra.mxu0 0.0
    %753 = vmatprep.subr.mxu0 0.0
    %754 = vmatpush1.msra.mxu0 0.0
    %755 = vmatprep.subr.mxu0 0.0
    %756 = vmatpush1.msra.mxu0 0.0
    %757 = vmatprep.subr.mxu0 0.0
    %758 = vmatpush1.msra.mxu0 0.0
    %759 = vmatprep.subr.mxu0 0.0
    %760 = vmatpush1.msra.mxu0 0.0
    %761 = vmatprep.subr.mxu0 0.0
    %762 = vmatpush1.msra.mxu0 0.0
    %763 = vmatprep.subr.mxu0 0.0
    %764 = vmatpush1.msra.mxu0 0.0
    %765 = vmatprep.subr.mxu0 0.0
    %766 = vmatpush1.msra.mxu0 0.0
    %767 = vmatprep.subr.mxu0 0.0
    %768 = vmatpush1.msra.mxu0 0.0
    %769 = vmatprep.subr.mxu0 0.0
    %770 = vmatpush1.msra.mxu0 %v83
    %771 = vmatprep.subr.mxu0 0.0
    %772 = vmatpush1.msra.mxu0 %v82
    %773 = vmatprep.subr.mxu0 0.0
    %774 = vmatpush1.msra.mxu0 %v81
    %775 = vmatprep.subr.mxu0 0.0
    %776 = vmatpush1.msra.mxu0 %v80
    %777 = vmatprep.subr.mxu0 0.0
    %778 = vmatpush2.msra.mxu0 0.0
    %779 = vmatprep.subr.mxu0 0.0
    %780 = vmatpush2.msra.mxu0 0.0
    %781 = vmatprep.subr.mxu0 0.0
    %782 = vmatpush2.msra.mxu0 0.0
    %783 = vmatprep.subr.mxu0 0.0
    %784 = vmatpush2.msra.mxu0 0.0
    %785 = vmatprep.subr.mxu0 0.0
    %786 = vmatpush2.msra.mxu0 0.0
    %787 = vmatprep.subr.mxu0 0.0
    %788 = vmatpush2.msra.mxu0 0.0
    %789 = vmatprep.subr.mxu0 0.0
    %790 = vmatpush2.msra.mxu0 0.0
    %791 = vmatprep.subr.mxu0 0.0
    %792 = vmatpush2.msra.mxu0 0.0
    %793 = vmatprep.subr.mxu0 0.0
    %794 = vmatpush2.msra.mxu0 0.0
    %795 = vmatprep.subr.mxu0 0.0
    %796 = vmatpush2.msra.mxu0 0.0
    %797 = vmatprep.subr.mxu0 0.0
    %798 = vmatpush2.msra.mxu0 0.0
    %799 = vmatprep.subr.mxu0 0.0
    %800 = vmatpush2.msra.mxu0 0.0
    %801 = vmatprep.subr.mxu0 0.0
    %802 = vmatpush2.msra.mxu0 0.0
    %803 = vmatprep.subr.mxu0 0.0
    %804 = vmatpush2.msra.mxu0 0.0
    %805 = vmatprep.subr.mxu0 0.0
    %806 = vmatpush2.msra.mxu0 0.0
    %807 = vmatprep.subr.mxu0 0.0
    %808 = vmatpush2.msra.mxu0 0.0
    %809 = vmatprep.mubr.f32.mxu0 0.0
    %810 = vmatmul.mubr.f32.gmra.mxu0 %v743
    %v811 = vpop.f32.mrf.mxu0
    %v812 = vadd.f32 0.0, %v811
    %v813 = vpop.f32.mrf.mxu0
    %814 = vdwg.mxu0
    %v816 = vrot.slane %v812, 2
    %v818 = vadd.f32 %v192, %v816
    %v819 = vtanh.pop %v818
    %v821 = vrot.slane %v819, 6
    %v822 = vsel %vm196, %v821, 0
    %824 = vmatprep.subr.mxu0 0.0
    %825 = vmatpush1.msra.mxu0 0.0
    %826 = vmatprep.subr.mxu0 0.0
    %827 = vmatpush1.msra.mxu0 0.0
    %828 = vmatprep.subr.mxu0 0.0
    %829 = vmatpush1.msra.mxu0 0.0
    %830 = vmatprep.subr.mxu0 0.0
    %831 = vmatpush1.msra.mxu0 0.0
    %832 = vmatprep.subr.mxu0 0.0
    %833 = vmatpush1.msra.mxu0 0.0
    %834 = vmatprep.subr.mxu0 0.0
    %835 = vmatpush1.msra.mxu0 0.0
    %836 = vmatprep.subr.mxu0 0.0
    %837 = vmatpush1.msra.mxu0 0.0
    %838 = vmatprep.subr.mxu0 0.0
    %839 = vmatpush1.msra.mxu0 0.0
    %840 = vmatprep.subr.mxu0 0.0
    %841 = vmatpush1.msra.mxu0 0.0
    %842 = vmatprep.subr.mxu0 0.0
    %843 = vmatpush1.msra.mxu0 0.0
    %844 = vmatprep.subr.mxu0 0.0
    %845 = vmatpush1.msra.mxu0 0.0
    %846 = vmatprep.subr.mxu0 0.0
    %847 = vmatpush1.msra.mxu0 0.0
    %848 = vmatprep.subr.mxu0 0.0
    %849 = vmatpush1.msra.mxu0 %v87
    %850 = vmatprep.subr.mxu0 0.0
    %851 = vmatpush1.msra.mxu0 %v86
    %852 = vmatprep.subr.mxu0 0.0
    %853 = vmatpush1.msra.mxu0 %v85
    %854 = vmatprep.subr.mxu0 0.0
    %855 = vmatpush1.msra.mxu0 %v84
    %856 = vmatprep.subr.mxu0 0.0
    %857 = vmatpush2.msra.mxu0 0.0
    %858 = vmatprep.subr.mxu0 0.0
    %859 = vmatpush2.msra.mxu0 0.0
    %860 = vmatprep.subr.mxu0 0.0
    %861 = vmatpush2.msra.mxu0 0.0
    %862 = vmatprep.subr.mxu0 0.0
    %863 = vmatpush2.msra.mxu0 0.0
    %864 = vmatprep.subr.mxu0 0.0
    %865 = vmatpush2.msra.mxu0 0.0
    %866 = vmatprep.subr.mxu0 0.0
    %867 = vmatpush2.msra.mxu0 0.0
    %868 = vmatprep.subr.mxu0 0.0
    %869 = vmatpush2.msra.mxu0 0.0
    %870 = vmatprep.subr.mxu0 0.0
    %871 = vmatpush2.msra.mxu0 0.0
    %872 = vmatprep.subr.mxu0 0.0
    %873 = vmatpush2.msra.mxu0 0.0
    %874 = vmatprep.subr.mxu0 0.0
    %875 = vmatpush2.msra.mxu0 0.0
    %876 = vmatprep.subr.mxu0 0.0
    %877 = vmatpush2.msra.mxu0 0.0
    %878 = vmatprep.subr.mxu0 0.0
    %879 = vmatpush2.msra.mxu0 0.0
    %880 = vmatprep.subr.mxu0 0.0
    %881 = vmatpush2.msra.mxu0 0.0
    %882 = vmatprep.subr.mxu0 0.0
    %883 = vmatpush2.msra.mxu0 0.0
    %884 = vmatprep.subr.mxu0 0.0
    %885 = vmatpush2.msra.mxu0 0.0
    %886 = vmatprep.subr.mxu0 0.0
    %887 = vmatpush2.msra.mxu0 0.0
    %888 = vmatprep.mubr.f32.mxu0 0.0
    %889 = vmatmul.mubr.f32.gmra.mxu0 %v822
    %v890 = vpop.f32.mrf.mxu0
    %v891 = vadd.f32 %v98, %v890
    %v892 = vpop.f32.mrf.mxu0
    %893 = vdwg.mxu0
    %v894 = vtanh.pop %v891
    %v896 = vsel %vm196, %v894, 0
    %898 = vmatprep.subr.mxu0 0.0
    %899 = vmatpush1.msra.mxu0 0.0
    %900 = vmatprep.subr.mxu0 0.0
    %901 = vmatpush1.msra.mxu0 0.0
    %902 = vmatprep.subr.mxu0 0.0
    %903 = vmatpush1.msra.mxu0 0.0
    %904 = vmatprep.subr.mxu0 0.0
    %905 = vmatpush1.msra.mxu0 0.0
    %906 = vmatprep.subr.mxu0 0.0
    %907 = vmatpush1.msra.mxu0 0.0
    %908 = vmatprep.subr.mxu0 0.0
    %909 = vmatpush1.msra.mxu0 0.0
    %910 = vmatprep.subr.mxu0 0.0
    %911 = vmatpush1.msra.mxu0 0.0
    %912 = vmatprep.subr.mxu0 0.0
    %913 = vmatpush1.msra.mxu0 0.0
    %914 = vmatprep.subr.mxu0 0.0
    %915 = vmatpush1.msra.mxu0 0.0
    %916 = vmatprep.subr.mxu0 0.0
    %917 = vmatpush1.msra.mxu0 0.0
    %918 = vmatprep.subr.mxu0 0.0
    %919 = vmatpush1.msra.mxu0 0.0
    %920 = vmatprep.subr.mxu0 0.0
    %921 = vmatpush1.msra.mxu0 0.0
    %922 = vmatprep.subr.mxu0 0.0
    %923 = vmatpush1.msra.mxu0 %v87
    %924 = vmatprep.subr.mxu0 0.0
    %925 = vmatpush1.msra.mxu0 %v86
    %926 = vmatprep.subr.mxu0 0.0
    %927 = vmatpush1.msra.mxu0 %v85
    %928 = vmatprep.subr.mxu0 0.0
    %929 = vmatpush1.msra.mxu0 %v84
    %930 = vmatprep.subr.mxu0 0.0
    %931 = vmatpush2.msra.mxu0 0.0
    %932 = vmatprep.subr.mxu0 0.0
    %933 = vmatpush2.msra.mxu0 0.0
    %934 = vmatprep.subr.mxu0 0.0
    %935 = vmatpush2.msra.mxu0 0.0
    %936 = vmatprep.subr.mxu0 0.0
    %937 = vmatpush2.msra.mxu0 0.0
    %938 = vmatprep.subr.mxu0 0.0
    %939 = vmatpush2.msra.mxu0 0.0
    %940 = vmatprep.subr.mxu0 0.0
    %941 = vmatpush2.msra.mxu0 0.0
    %942 = vmatprep.subr.mxu0 0.0
    %943 = vmatpush2.msra.mxu0 0.0
    %944 = vmatprep.subr.mxu0 0.0
    %945 = vmatpush2.msra.mxu0 0.0
    %946 = vmatprep.subr.mxu0 0.0
    %947 = vmatpush2.msra.mxu0 0.0
    %948 = vmatprep.subr.mxu0 0.0
    %949 = vmatpush2.msra.mxu0 0.0
    %950 = vmatprep.subr.mxu0 0.0
    %951 = vmatpush2.msra.mxu0 0.0
    %952 = vmatprep.subr.mxu0 0.0
    %953 = vmatpush2.msra.mxu0 0.0
    %954 = vmatprep.subr.mxu0 0.0
    %955 = vmatpush2.msra.mxu0 0.0
    %956 = vmatprep.subr.mxu0 0.0
    %957 = vmatpush2.msra.mxu0 0.0
    %958 = vmatprep.subr.mxu0 0.0
    %959 = vmatpush2.msra.mxu0 0.0
    %960 = vmatprep.subr.mxu0 0.0
    %961 = vmatpush2.msra.mxu0 0.0
    %962 = vmatprep.mubr.f32.mxu0 0.0
    %963 = vmatmul.mubr.f32.gmra.mxu0 %v896
    %v964 = vpop.f32.mrf.mxu0
    %v965 = vadd.f32 %v98, %v964
    %v966 = vpop.f32.mrf.mxu0
    %967 = vdwg.mxu0
    %v968 = vtanh.pop %v965
    %v970 = vsel %vm196, %v968, 0
    %972 = vmatprep.subr.mxu0 0.0
    %973 = vmatpush1.msra.mxu0 0.0
    %974 = vmatprep.subr.mxu0 0.0
    %975 = vmatpush1.msra.mxu0 0.0
    %976 = vmatprep.subr.mxu0 0.0
    %977 = vmatpush1.msra.mxu0 0.0
    %978 = vmatprep.subr.mxu0 0.0
    %979 = vmatpush1.msra.mxu0 0.0
    %980 = vmatprep.subr.mxu0 0.0
    %981 = vmatpush1.msra.mxu0 0.0
    %982 = vmatprep.subr.mxu0 0.0
    %983 = vmatpush1.msra.mxu0 0.0
    %984 = vmatprep.subr.mxu0 0.0
    %985 = vmatpush1.msra.mxu0 0.0
    %986 = vmatprep.subr.mxu0 0.0
    %987 = vmatpush1.msra.mxu0 0.0
    %988 = vmatprep.subr.mxu0 0.0
    %989 = vmatpush1.msra.mxu0 0.0
    %990 = vmatprep.subr.mxu0 0.0
    %991 = vmatpush1.msra.mxu0 0.0
    %992 = vmatprep.subr.mxu0 0.0
    %993 = vmatpush1.msra.mxu0 0.0
    %994 = vmatprep.subr.mxu0 0.0
    %995 = vmatpush1.msra.mxu0 0.0
    %996 = vmatprep.subr.mxu0 0.0
    %997 = vmatpush1.msra.mxu0 %v87
    %998 = vmatprep.subr.mxu0 0.0
    %999 = vmatpush1.msra.mxu0 %v86
    %1000 = vmatprep.subr.mxu0 0.0
    %1001 = vmatpush1.msra.mxu0 %v85
    %1002 = vmatprep.subr.mxu0 0.0
    %1003 = vmatpush1.msra.mxu0 %v84
    %1004 = vmatprep.subr.mxu0 0.0
    %1005 = vmatpush2.msra.mxu0 0.0
    %1006 = vmatprep.subr.mxu0 0.0
    %1007 = vmatpush2.msra.mxu0 0.0
    %1008 = vmatprep.subr.mxu0 0.0
    %1009 = vmatpush2.msra.mxu0 0.0
    %1010 = vmatprep.subr.mxu0 0.0
    %1011 = vmatpush2.msra.mxu0 0.0
    %1012 = vmatprep.subr.mxu0 0.0
    %1013 = vmatpush2.msra.mxu0 0.0
    %1014 = vmatprep.subr.mxu0 0.0
    %1015 = vmatpush2.msra.mxu0 0.0
    %1016 = vmatprep.subr.mxu0 0.0
    %1017 = vmatpush2.msra.mxu0 0.0
    %1018 = vmatprep.subr.mxu0 0.0
    %1019 = vmatpush2.msra.mxu0 0.0
    %1020 = vmatprep.subr.mxu0 0.0
    %1021 = vmatpush2.msra.mxu0 0.0
    %1022 = vmatprep.subr.mxu0 0.0
    %1023 = vmatpush2.msra.mxu0 0.0
    %1024 = vmatprep.subr.mxu0 0.0
    %1025 = vmatpush2.msra.mxu0 0.0
    %1026 = vmatprep.subr.mxu0 0.0
    %1027 = vmatpush2.msra.mxu0 0.0
    %1028 = vmatprep.subr.mxu0 0.0
    %1029 = vmatpush2.msra.mxu0 0.0
    %1030 = vmatprep.subr.mxu0 0.0
    %1031 = vmatpush2.msra.mxu0 0.0
    %1032 = vmatprep.subr.mxu0 0.0
    %1033 = vmatpush2.msra.mxu0 0.0
    %1034 = vmatprep.subr.mxu0 0.0
    %1035 = vmatpush2.msra.mxu0 0.0
    %1036 = vmatprep.mubr.f32.mxu0 0.0
    %1037 = vmatmul.mubr.f32.gmra.mxu0 %v970
    %v1038 = vpop.f32.mrf.mxu0
    %v1039 = vadd.f32 %v98, %v1038
    %v1040 = vpop.f32.mrf.mxu0
    %1041 = vdwg.mxu0
    %v1042 = vtanh.pop %v1039
    %v1044 = vsel %vm196, %v1042, 0
    %1046 = vmatprep.subr.mxu0 0.0
    %1047 = vmatpush1.msra.mxu0 0.0
    %1048 = vmatprep.subr.mxu0 0.0
    %1049 = vmatpush1.msra.mxu0 0.0
    %1050 = vmatprep.subr.mxu0 0.0
    %1051 = vmatpush1.msra.mxu0 0.0
    %1052 = vmatprep.subr.mxu0 0.0
    %1053 = vmatpush1.msra.mxu0 0.0
    %1054 = vmatprep.subr.mxu0 0.0
    %1055 = vmatpush1.msra.mxu0 0.0
    %1056 = vmatprep.subr.mxu0 0.0
    %1057 = vmatpush1.msra.mxu0 0.0
    %1058 = vmatprep.subr.mxu0 0.0
    %1059 = vmatpush1.msra.mxu0 0.0
    %1060 = vmatprep.subr.mxu0 0.0
    %1061 = vmatpush1.msra.mxu0 0.0
    %1062 = vmatprep.subr.mxu0 0.0
    %1063 = vmatpush1.msra.mxu0 0.0
    %1064 = vmatprep.subr.mxu0 0.0
    %1065 = vmatpush1.msra.mxu0 0.0
    %1066 = vmatprep.subr.mxu0 0.0
    %1067 = vmatpush1.msra.mxu0 0.0
    %1068 = vmatprep.subr.mxu0 0.0
    %1069 = vmatpush1.msra.mxu0 0.0
    %1070 = vmatprep.subr.mxu0 0.0
    %1071 = vmatpush1.msra.mxu0 %v87
    %1072 = vmatprep.subr.mxu0 0.0
    %1073 = vmatpush1.msra.mxu0 %v86
    %1074 = vmatprep.subr.mxu0 0.0
    %1075 = vmatpush1.msra.mxu0 %v85
    %1076 = vmatprep.subr.mxu0 0.0
    %1077 = vmatpush1.msra.mxu0 %v84
    %1078 = vmatprep.subr.mxu0 0.0
    %1079 = vmatpush2.msra.mxu0 0.0
    %1080 = vmatprep.subr.mxu0 0.0
    %1081 = vmatpush2.msra.mxu0 0.0
    %1082 = vmatprep.subr.mxu0 0.0
    %1083 = vmatpush2.msra.mxu0 0.0
    %1084 = vmatprep.subr.mxu0 0.0
    %1085 = vmatpush2.msra.mxu0 0.0
    %1086 = vmatprep.subr.mxu0 0.0
    %1087 = vmatpush2.msra.mxu0 0.0
    %1088 = vmatprep.subr.mxu0 0.0
    %1089 = vmatpush2.msra.mxu0 0.0
    %1090 = vmatprep.subr.mxu0 0.0
    %1091 = vmatpush2.msra.mxu0 0.0
    %1092 = vmatprep.subr.mxu0 0.0
    %1093 = vmatpush2.msra.mxu0 0.0
    %1094 = vmatprep.subr.mxu0 0.0
    %1095 = vmatpush2.msra.mxu0 0.0
    %1096 = vmatprep.subr.mxu0 0.0
    %1097 = vmatpush2.msra.mxu0 0.0
    %1098 = vmatprep.subr.mxu0 0.0
    %1099 = vmatpush2.msra.mxu0 0.0
    %1100 = vmatprep.subr.mxu0 0.0
    %1101 = vmatpush2.msra.mxu0 0.0
    %1102 = vmatprep.subr.mxu0 0.0
    %1103 = vmatpush2.msra.mxu0 0.0
    %1104 = vmatprep.subr.mxu0 0.0
    %1105 = vmatpush2.msra.mxu0 0.0
    %1106 = vmatprep.subr.mxu0 0.0
    %1107 = vmatpush2.msra.mxu0 0.0
    %1108 = vmatprep.subr.mxu0 0.0
    %1109 = vmatpush2.msra.mxu0 0.0
    %1110 = vmatprep.mubr.f32.mxu0 0.0
    %1111 = vmatmul.mubr.f32.gmra.mxu0 %v1044
    %v1112 = vpop.f32.mrf.mxu0
    %v1113 = vadd.f32 %v98, %v1112
    %v1114 = vpop.f32.mrf.mxu0
    %1115 = vdwg.mxu0
    %v1116 = vtanh.pop %v1113
    %v1117 = vrot.slane %v968, 6
    %v1119 = vrot.slane %v1042, 4
    %v1122 = vrot.slane %v1116, 2
    %vm1124 = vcmask 1041408
    %v1125 = vsel %vm1124, %v894, %v1117
    %v1126 = vsel %vm116, %v1125, %v1119
    %vm1127 = vcmask 1045504
    %v1128 = vsel %vm1127, %v1126, %v1122
    %v1130 = vlaneseq
    %v1131 = vshrl.u32 %v1130, 7
    %v1132 = vsub.s32 0, %v1131
    %v1133 = vrot.slane %v100, %v1132
    %v1136 = vsel %vm196, %v1128, 0
    %1138 = vmatprep.subr.mxu0 0.0
    %1139 = vmatpush1.msra.mxu0 0.0
    %1140 = vmatprep.subr.mxu0 0.0
    %1141 = vmatpush1.msra.mxu0 0.0
    %1142 = vmatprep.subr.mxu0 0.0
    %1143 = vmatpush1.msra.mxu0 0.0
    %1144 = vmatprep.subr.mxu0 0.0
    %1145 = vmatpush1.msra.mxu0 0.0
    %1146 = vmatprep.subr.mxu0 0.0
    %1147 = vmatpush1.msra.mxu0 0.0
    %1148 = vmatprep.subr.mxu0 0.0
    %1149 = vmatpush1.msra.mxu0 0.0
    %1150 = vmatprep.subr.mxu0 0.0
    %1151 = vmatpush1.msra.mxu0 0.0
    %1152 = vmatprep.subr.mxu0 0.0
    %1153 = vmatpush1.msra.mxu0 0.0
    %1154 = vmatprep.subr.mxu0 0.0
    %1155 = vmatpush1.msra.mxu0 0.0
    %1156 = vmatprep.subr.mxu0 0.0
    %1157 = vmatpush1.msra.mxu0 0.0
    %1158 = vmatprep.subr.mxu0 0.0
    %1159 = vmatpush1.msra.mxu0 0.0
    %1160 = vmatprep.subr.mxu0 0.0
    %1161 = vmatpush1.msra.mxu0 0.0
    %1162 = vmatprep.subr.mxu0 0.0
    %1163 = vmatpush1.msra.mxu0 %v91
    %1164 = vmatprep.subr.mxu0 0.0
    %1165 = vmatpush1.msra.mxu0 %v90
    %1166 = vmatprep.subr.mxu0 0.0
    %1167 = vmatpush1.msra.mxu0 %v89
    %1168 = vmatprep.subr.mxu0 0.0
    %1169 = vmatpush1.msra.mxu0 %v88
    %1170 = vmatprep.subr.mxu0 0.0
    %1171 = vmatpush2.msra.mxu0 0.0
    %1172 = vmatprep.subr.mxu0 0.0
    %1173 = vmatpush2.msra.mxu0 0.0
    %1174 = vmatprep.subr.mxu0 0.0
    %1175 = vmatpush2.msra.mxu0 0.0
    %1176 = vmatprep.subr.mxu0 0.0
    %1177 = vmatpush2.msra.mxu0 0.0
    %1178 = vmatprep.subr.mxu0 0.0
    %1179 = vmatpush2.msra.mxu0 0.0
    %1180 = vmatprep.subr.mxu0 0.0
    %1181 = vmatpush2.msra.mxu0 0.0
    %1182 = vmatprep.subr.mxu0 0.0
    %1183 = vmatpush2.msra.mxu0 0.0
    %1184 = vmatprep.subr.mxu0 0.0
    %1185 = vmatpush2.msra.mxu0 0.0
    %1186 = vmatprep.subr.mxu0 0.0
    %1187 = vmatpush2.msra.mxu0 0.0
    %1188 = vmatprep.subr.mxu0 0.0
    %1189 = vmatpush2.msra.mxu0 0.0
    %1190 = vmatprep.subr.mxu0 0.0
    %1191 = vmatpush2.msra.mxu0 0.0
    %1192 = vmatprep.subr.mxu0 0.0
    %1193 = vmatpush2.msra.mxu0 0.0
    %1194 = vmatprep.subr.mxu0 0.0
    %1195 = vmatpush2.msra.mxu0 0.0
    %1196 = vmatprep.subr.mxu0 0.0
    %1197 = vmatpush2.msra.mxu0 0.0
    %1198 = vmatprep.subr.mxu0 0.0
    %1199 = vmatpush2.msra.mxu0 0.0
    %1200 = vmatprep.subr.mxu0 0.0
    %1201 = vmatpush2.msra.mxu0 0.0
    %1202 = vmatprep.mubr.f32.mxu0 0.0
    %1203 = vmatmul.mubr.f32.gmra.mxu0 %v1136
    %v1204 = vpop.f32.mrf.mxu0
    %v1205 = vadd.f32 %v1133, %v1204
    %v1206 = vpop.f32.mrf.mxu0
    %1207 = vdwg.mxu0
    %1208 = vst.msk [vmem:[%s9] sm:$0xff] %vm109, %v1205
    // Predicated region
    $region54: #{tpu_custom_call.1} parent=1 // pred_check
      _
    $region55: #{tpu_custom_call.1} parent=1 // pred_check_branch
      %1210 = sbr.rel (0) target = $region57
    $region56: #{tpu_custom_call.1} parent=1 // pred_region
      _
    $region57: #{tpu_custom_call.1} parent=1 // pred_fallthru
      _
    // Predicated region
    $region58: #{tpu_custom_call.1} parent=1 // pred_check
      _
    $region59: #{tpu_custom_call.1} parent=1 // pred_check_branch
      %1212 = sbr.rel (0) target = $region61
    $region60: #{tpu_custom_call.1} parent=1 // pred_region
      _
    $region61: #{tpu_custom_call.1} parent=1 // pred_fallthru
      _
    %1213 = vsyncpa [#allocation3], 1
    %1214 = vsyncpa [#allocation5], 1
    %1215 = vsyncpa [#allocation8], 1

</llo_original>
